<compile_context>
chip_gen: v7x
topology: tpu7x:2x2x1
jax: 0.10.0
libtpu: 0.0.40
codegen_flags: <defaults>
</compile_context>

<pallas_src>
import jax
import jax.numpy as jnp
from jax.experimental import pallas as pl
from jax.experimental.pallas import tpu as pltpu


def _compose_perms(p1, p2):
    """Permutation equivalent to transpose(transpose(x, p1), p2)."""
    return tuple(p1[a] for a in p2)


def _dma_copy_kernel(x_hbm, o_hbm, sem):
    # Whole-tensor HBM -> HBM copy driven by the DMA engine.  No VMEM
    # staging and no grid: one descriptor, runs at HBM bandwidth.
    cp = pltpu.make_async_copy(x_hbm, o_hbm, sem)
    cp.start()
    cp.wait()


def _identity_copy_pallas(x):
    """Materialize an identity copy of `x` with a direct HBM->HBM DMA."""
    return pl.pallas_call(
        _dma_copy_kernel,
        out_shape=jax.ShapeDtypeStruct(x.shape, x.dtype),
        in_specs=[pl.BlockSpec(memory_space=pl.ANY)],
        out_specs=pl.BlockSpec(memory_space=pl.ANY),
        scratch_shapes=[pltpu.SemaphoreType.DMA(())],
    )(x)


def redundant_permute_net(x, *, force_kernel=False):
    """Pallas implementation of RedundantPermuteNet.forward."""
    p1 = (2, 1, 0)
    p2 = (2, 1, 0)
    composed = _compose_perms(p1, p2)   # -> (0, 1, 2): identity

    if composed != tuple(range(x.ndim)):
        # Never reached for this module (the two permutes cancel).
        # TODO(synk): BlockSpec/DMA-based relayout for non-identity
        # compositions; the trivial HBM alias would be a RAW hazard there.
        x = jnp.transpose(x, composed)

    if not force_kernel:
        # Redundant permute removed: no data movement, no kernel launch.
        return x

    return _identity_copy_pallas(x)


if __name__ == "__main__":
    key = jax.random.PRNGKey(0)
    k1, k2 = jax.random.split(key)

    # matches RedundantPermuteNet.get_example_inputs(): torch.randn(3, 4, 5)
    x_small = jax.random.normal(k1, (3, 4, 5), dtype=jnp.float32)
    # larger case to exercise the DMA copy on a real-sized tensor
    x_big = jax.random.normal(k2, (64, 64, 128), dtype=jnp.float32)

    # Fast path: the redundant permute is eliminated entirely (no kernel).
    z_fast = jax.block_until_ready(redundant_permute_net(x_small))
    # Forced Pallas path (runs the HBM->HBM DMA kernel) on both shapes.
    z_small = jax.block_until_ready(
        redundant_permute_net(x_small, force_kernel=True))
    z_big = jax.block_until_ready(
        redundant_permute_net(x_big, force_kernel=True))

    for inp, out in ((x_small, z_fast), (x_small, z_small), (x_big, z_big)):
        ref = jnp.transpose(jnp.transpose(inp, (2, 1, 0)), (2, 1, 0))
        assert out.shape == inp.shape and out.dtype == inp.dtype
        assert jnp.allclose(out, ref), "mismatch vs reference"

    print("KERNEL_OK")
</pallas_src>

<mosaic_0001>
module attributes {stable_mosaic.version = 11 : i64} {
  func.func @_dma_copy_kernel(%arg0: memref<3x4x5xf32, #tpu.memory_space<any>>, %arg1: memref<3x4x5xf32, #tpu.memory_space<any>>, %arg2: memref<!tpu.dma_semaphore, #tpu.memory_space<semaphore_mem>>) attributes {dimension_semantics = [], scalar_prefetch = 0 : i64, scratch_operands = 1 : i64, tpu.core_type = #tpu.core_type<tc>} {
    tpu.enqueue_dma source(%arg0 : memref<3x4x5xf32, #tpu.memory_space<any>>) target(%arg1 : memref<3x4x5xf32, #tpu.memory_space<any>>) target_semaphore(%arg2 : memref<!tpu.dma_semaphore, #tpu.memory_space<semaphore_mem>>)
    tpu.wait_dma2 semaphore(%arg2 : memref<!tpu.dma_semaphore, #tpu.memory_space<semaphore_mem>>) src(%arg0 : memref<3x4x5xf32, #tpu.memory_space<any>>) dst(%arg1 : memref<3x4x5xf32, #tpu.memory_space<any>>)
    return
  }
}

</mosaic_0001>

<llo_original>
// kernel: tpu_custom_call.1
$region0: #{tpu_custom_call.1}
  #allocation0 [shape = 'u32[]', space=smem, size = 0x4, offset = 0x4, fixed_abs, tag = 'smem constant byte address 0x4 - core index']
  #allocation1 [shape = 'u32[144,128]{1,0:T(1,128)}', space=vmem, size = 0x12000, scoped, tag = 'internal scratch']
  #allocation2 [shape = 's32[1]{0}', space=sflag, size = 0x4, scoped, tag = 'scratch operand']
  #allocation3 [shape = 's32[]', space=sflag, size = 0x4, offset = 0, fixed_abs, tag = 'sflag constant byte address 0x0 - dummy sync flag']
  #allocation4 [shape = 'u32[0]{0}', space=smem, size = 0, offset = 0, fixed_abs, tag = 'smem constant byte address 0x0 - null']
  %s0 = inlined_call_operand.hbm [shape: f32[3,4,5], index: 0, kind: input, shape index: {}]
  %s1 = inlined_call_operand.hbm [shape: f32[3,4,5], index: 1, kind: output, shape index: {}]
  %s2 = sld [smem:[#allocation0]]
  $region2: #{tpu_custom_call.1} parent=0
    _
  %s4 = ssub.s32 1, %s2
  %s5 = scalar_select 0, %s4, %s2
  %s7 = sshll.u32 1, 14
  %s8 = sxor.u32 4294967295, %s7
  %s11 = sshll.u32 3, 24
  %s12 = sxor.u32 4294967295, %s11
  %s13 = sand.u32 0, %s12
  %s15 = sor.u32 %s13, 0
  %18 = dma.general %s0, 192, %s1, [#allocation2], [#allocation3], [#allocation4], %s15, 0
  %s19 = smul.u32 3, 4
  %s20 = smul.u32 %s19, 1
  %s21 = sshll.u32 %s20, 4
  %22 = dma.done [#allocation2], %s21
  %23 = vsyncmov [#allocation2]
  %s24 = vpop.sfrf %23
  %p25 = scmp.eq.s32.totalorder %s24, 0
  %p26 = pneg %p25
  %28 = shalt.err (%p26)

</llo_original>
